<compile_context>
chip_gen: v5e
topology: v5e:2x2
jax: 0.10.0
libtpu: 0.0.40
codegen_flags: <defaults>
</compile_context>

<pallas_src>
import functools

import jax
import jax.numpy as jnp
import numpy as np
from jax.experimental import pallas as pl
from jax.experimental.pallas import tpu as pltpu


def _softplus(x):
    # Numerically stable softplus on VPU/EUP (f32 math, f32 accumulate).
    return jnp.maximum(x, 0.0) + jnp.log(1.0 + jnp.exp(-jnp.abs(x)))


def _triple_bce_partials_kernel(pix_ref, tgt_ref, dec_ref,
                                pix_out, tgt_out, dec_out,
                                pix_acc, tgt_acc, dec_acc, *, L):
    i = pl.program_id(1)

    @pl.when(i == 0)
    def _init():
        pix_acc[...] = jnp.zeros_like(pix_acc)
        tgt_acc[...] = jnp.zeros_like(tgt_acc)
        dec_acc[...] = jnp.zeros_like(dec_acc)

    # Load this spatial tile; storage dtype (bf16) is cast to f32 in-vreg.
    t = tgt_ref[...].astype(jnp.float32)       # (B,  TWH)
    xp = pix_ref[...].astype(jnp.float32)      # (B,  TWH)
    xd = dec_ref[...].astype(jnp.float32)      # (B*L, TWH)

    # ---- pixel BCE, pos_weight = 2, single-softplus form --------------------
    #   2*t*sp(-x) + (1-t)*sp(x) == sp(x) + t*(sp(x) - 2x)
    sp_p = _softplus(xp)
    pix_el = sp_p + t * (sp_p - 2.0 * xp)
    pix_acc[...] += jnp.sum(pix_el, axis=1, keepdims=True)            # (B,1)

    # ---- per-image target sums (img_target and the dec mask) ----------------
    tgt_acc[...] += jnp.sum(t, axis=1, keepdims=True)                 # (B,1)

    # ---- decoder (deep-supervision) BCE --------------------------------------
    # dec_target flat row r == targets[r % B] == row r of jnp.tile(t, (L,1)):
    # a cheap sublane broadcast of the resident target tile (no MXU, no HBM copy).
    tg = jnp.tile(t, (L, 1))                                           # (B*L, TWH)
    sp_d = _softplus(xd)
    dec_el = sp_d - tg * xd                                            # weight == 1
    # Per-decoder-row partial sums only; the per-image grouping and the
    # img_target>0 mask are applied on B*L scalars in the epilogue.
    dec_acc[...] += jnp.sum(dec_el, axis=1, keepdims=True)             # (B*L,1)

    @pl.when(i == pl.num_programs(1) - 1)
    def _flush():
        pix_out[...] = pix_acc[...].reshape(pix_out.shape)
        tgt_out[...] = tgt_acc[...].reshape(tgt_out.shape)
        dec_out[...] = dec_acc[...].reshape(dec_out.shape)


def _vmem_limit_bytes():
    """Generation-aware VMEM limit: ~7/8 of per-core capacity, capped at 100 MiB."""
    cap = 64 << 20  # conservative fallback (v7x per-TC size)
    try:
        info = pltpu.get_tpu_info()
        cap = int(getattr(info, "vmem_capacity_bytes", cap))
    except Exception:
        pass
    return int(min(cap - cap // 8, 100 << 20))


def _pick_tile_wh(wh, bytes_per_col, budget_bytes):
    """Largest multiple-of-128 divisor of `wh` whose double-buffered footprint
    (using the real storage dtype bytes of each stream) fits the budget; falls
    back to the full width (block == full dim is always legal)."""
    cands = [t for t in range(128, wh + 1, 128) if wh % t == 0]
    if not cands:
        return wh
    fit = [t for t in cands if 2 * bytes_per_col * t <= budget_bytes]
    return max(fit) if fit else min(cands)


def triple_bce_loss(pix, img, dec, targets, *, pix_w, img_w, dec_w,
                    tile_wh=None, n_splits=None, cast_targets_bf16=True):
    B, W, H = targets.shape
    L = dec.shape[1]
    WH = W * H
    BL = B * L

    # Free reshapes; targets streamed as bf16 (0/1 masks are exact in bf16).
    tgt_src = targets.astype(jnp.bfloat16) if cast_targets_bf16 else targets
    pix2 = pix.reshape(B, WH)
    tgt2 = tgt_src.reshape(B, WH)
    dec2 = dec.reshape(BL, WH)

    # Per-lane-column HBM bytes with the real storage dtypes of each stream.
    bytes_per_col = (B * pix2.dtype.itemsize
                     + B * tgt2.dtype.itemsize
                     + BL * dec2.dtype.itemsize)

    vmem_limit = _vmem_limit_bytes()
    if tile_wh is None:
        tile_wh = _pick_tile_wh(WH, bytes_per_col, budget_bytes=vmem_limit // 2)
    assert WH % tile_wh == 0, "spatial tile must divide W*H"
    n_tiles = WH // tile_wh

    # Leading "parallel" axis: 2-way split of the tile range (sharded across the
    # two TensorCores on v7x; harmlessly serial on single-core v5e/v6e).
    if n_splits is None:
        n_splits = 2 if (n_tiles >= 2 and n_tiles % 2 == 0) else 1
    assert n_tiles % n_splits == 0
    tiles_per_split = n_tiles // n_splits

    kernel = functools.partial(_triple_bce_partials_kernel, L=L)

    col_map = lambda c, i: (0, c * tiles_per_split + i)
    out_map = lambda c, i: (c, 0, 0)

    pix_part, tgt_part, dec_part = pl.pallas_call(
        kernel,
        out_shape=(
            jax.ShapeDtypeStruct((n_splits, B, 1), jnp.float32),
            jax.ShapeDtypeStruct((n_splits, B, 1), jnp.float32),
            jax.ShapeDtypeStruct((n_splits, BL, 1), jnp.float32),
        ),
        grid_spec=pltpu.PrefetchScalarGridSpec(
            num_scalar_prefetch=0,
            grid=(n_splits, tiles_per_split),
            in_specs=[
                pl.BlockSpec((B, tile_wh), col_map),     # pix tile
                pl.BlockSpec((B, tile_wh), col_map),     # targets tile
                pl.BlockSpec((BL, tile_wh), col_map),    # dec tile (dominant stream)
            ],
            out_specs=[
                pl.BlockSpec((1, B, 1), out_map),        # per-split pixel-BCE sums
                pl.BlockSpec((1, B, 1), out_map),        # per-split target sums
                pl.BlockSpec((1, BL, 1), out_map),       # per-split decoder-BCE row sums
            ],
            scratch_shapes=[
                pltpu.VMEM((B, 1), jnp.float32),
                pltpu.VMEM((B, 1), jnp.float32),
                pltpu.VMEM((BL, 1), jnp.float32),
            ],
        ),
        compiler_params=pltpu.CompilerParams(
            dimension_semantics=("parallel", "arbitrary"),
            vmem_limit_bytes=vmem_limit,
        ),
    )(pix2, tgt2, dec2)

    # ---- tiny O(B) scalar epilogue (plain JAX) -------------------------------
    pix_sum = jnp.sum(pix_part)                               # scalar
    tgt_sum = jnp.sum(tgt_part, axis=0)[:, 0]                 # (B,)
    dec_row = jnp.sum(dec_part, axis=0)[:, 0]                 # (B*L,)

    img_target = tgt_sum / float(WH)                          # (B,)
    x_img = img.reshape(B).astype(jnp.float32)
    img_loss = jnp.mean(_softplus(x_img) - img_target * x_img)

    pix_loss = pix_sum / float(B * WH)

    dec_img = dec_row.reshape(B, L).sum(axis=1)               # (B,)
    mask = (img_target > 0.0).astype(jnp.float32)
    n_pos = jnp.sum(mask)
    dec_loss = jnp.where(
        n_pos > 0,
        jnp.sum(dec_img * mask) / (jnp.maximum(n_pos, 1.0) * float(L * WH)),
        0.0)

    return pix_w * pix_loss + img_w * img_loss + dec_w * dec_loss


def _reference_loss(pix, img, dec, targets, *, pix_w, img_w, dec_w):
    """Pure-JAX reference mirroring the PyTorch forward (f32 math)."""
    B, W, H = targets.shape
    L = dec.shape[1]
    t = targets.astype(jnp.float32)
    x_pix = pix.astype(jnp.float32)
    x_img = img.astype(jnp.float32)
    x_dec = dec.astype(jnp.float32)

    def bce(x, tt, pos_w=1.0):
        sp = jax.nn.softplus
        return pos_w * tt * sp(-x) + (1.0 - tt) * sp(x)

    pix_loss = jnp.mean(bce(x_pix, t, pos_w=2.0))
    img_target = t.reshape(B, -1).mean(axis=1)
    img_loss = jnp.mean(bce(x_img, img_target))

    idx = (jnp.arange(B)[:, None] * L + jnp.arange(L)[None, :]) % B
    dec_target = t[idx]                                    # (B, L, W, H)
    mask = (img_target > 0).astype(jnp.float32)
    dec_el = bce(x_dec, dec_target)
    n_pos = jnp.sum(mask)
    dec_loss = jnp.where(
        n_pos > 0,
        jnp.sum(dec_el * mask[:, None, None, None]) / jnp.maximum(n_pos * L * W * H, 1.0),
        0.0)
    return pix_w * pix_loss + img_w * img_loss + dec_w * dec_loss


if __name__ == "__main__":
    key = jax.random.PRNGKey(0)
    k1, k2, k3, k4 = jax.random.split(key, 4)

    B, W, H, L = 2, 32, 32, 3
    pix_w, img_w, dec_w = 1.0, 0.5, 0.25

    targets = jax.random.bernoulli(k1, p=0.35, shape=(B, W, H)).astype(jnp.float32)
    # Large logit streams kept in bf16 (native storage dtype) -> half the HBM
    # traffic; the kernel upcasts to f32 in-register for the math.
    pix = jax.random.normal(k2, (B, W, H), dtype=jnp.float32).astype(jnp.bfloat16)
    img = jax.random.normal(k3, (B,), dtype=jnp.float32)
    dec = jax.random.normal(k4, (B, L, W, H), dtype=jnp.float32).astype(jnp.bfloat16)

    # tile_wh=128 forces an 8-step grid (2 splits x 4 tiles) at this small size so
    # both the parallel split and the pipelined accumulate/flush paths are
    # exercised; leave tile_wh=None in production.
    loss = triple_bce_loss(pix, img, dec, targets,
                           pix_w=pix_w, img_w=img_w, dec_w=dec_w, tile_wh=128)
    loss = jax.block_until_ready(loss)

    ref = _reference_loss(pix, img, dec, targets,
                          pix_w=pix_w, img_w=img_w, dec_w=dec_w)
    ref = jax.block_until_ready(ref)

    # Exact division everywhere now; the only differences are f32 summation order
    # (tiled vs tree-reduced mean). Tolerance tightened accordingly.
    np.testing.assert_allclose(np.asarray(loss), np.asarray(ref),
                               rtol=1e-4, atol=1e-6)
    print("KERNEL_OK")
</pallas_src>

<mosaic_0001>
module attributes {stable_mosaic.version = 11 : i64} {
  func.func @_triple_bce_partials_kernel(%arg0: i32, %arg1: i32, %arg2: memref<2x128xbf16, #tpu.memory_space<vmem>>, %arg3: memref<2x128xbf16, #tpu.memory_space<vmem>>, %arg4: memref<6x128xbf16, #tpu.memory_space<vmem>>, %arg5: memref<1x2x1xf32, #tpu.memory_space<vmem>>, %arg6: memref<1x2x1xf32, #tpu.memory_space<vmem>>, %arg7: memref<1x6x1xf32, #tpu.memory_space<vmem>>, %arg8: memref<2x1xf32, #tpu.memory_space<vmem>>, %arg9: memref<2x1xf32, #tpu.memory_space<vmem>>, %arg10: memref<6x1xf32, #tpu.memory_space<vmem>>) attributes {dimension_semantics = [#tpu.dimension_semantics<parallel>, #tpu.dimension_semantics<arbitrary>], iteration_bounds = array<i64: 2, 4>, scalar_prefetch = 0 : i64, scratch_operands = 3 : i64, tpu.core_type = #tpu.core_type<tc>, window_params = [{transform_indices = @transform_0, window_bounds = array<i64: 2, 128>}, {transform_indices = @transform_1, window_bounds = array<i64: 2, 128>}, {transform_indices = @transform_2, window_bounds = array<i64: 6, 128>}, {transform_indices = @transform_3, window_bounds = array<i64: 1, 2, 1>}, {transform_indices = @transform_4, window_bounds = array<i64: 1, 2, 1>}, {transform_indices = @transform_5, window_bounds = array<i64: 1, 6, 1>}]} {
    %c0_i32 = arith.constant 0 : i32
    %0 = arith.cmpi eq, %arg1, %c0_i32 : i32
    %1 = arith.extui %0 : i1 to i32
    %c0_i32_0 = arith.constant 0 : i32
    %2 = arith.cmpi ne, %1, %c0_i32_0 : i32
    scf.if %2 {
      %cst_28 = arith.constant 0.000000e+00 : f32
      %55 = vector.broadcast %cst_28 : f32 to vector<2x1xf32>
      %c0_29 = arith.constant 0 : index
      %c0_30 = arith.constant 0 : index
      %56 = vector.load %arg8[%c0_29, %c0_30] : memref<2x1xf32, #tpu.memory_space<vmem>>, vector<2x1xf32>
      tpu.vector_store %arg8[%c0_29, %c0_30], %55 {strides = array<i32>} : memref<2x1xf32, #tpu.memory_space<vmem>>, vector<2x1xf32>,
      %cst_31 = arith.constant 0.000000e+00 : f32
      %57 = vector.broadcast %cst_31 : f32 to vector<2x1xf32>
      %c0_32 = arith.constant 0 : index
      %c0_33 = arith.constant 0 : index
      %58 = vector.load %arg9[%c0_32, %c0_33] : memref<2x1xf32, #tpu.memory_space<vmem>>, vector<2x1xf32>
      tpu.vector_store %arg9[%c0_32, %c0_33], %57 {strides = array<i32>} : memref<2x1xf32, #tpu.memory_space<vmem>>, vector<2x1xf32>,
      %cst_34 = arith.constant 0.000000e+00 : f32
      %59 = vector.broadcast %cst_34 : f32 to vector<6x1xf32>
      %c0_35 = arith.constant 0 : index
      %c0_36 = arith.constant 0 : index
      %60 = vector.load %arg10[%c0_35, %c0_36] : memref<6x1xf32, #tpu.memory_space<vmem>>, vector<6x1xf32>
      tpu.vector_store %arg10[%c0_35, %c0_36], %59 {strides = array<i32>} : memref<6x1xf32, #tpu.memory_space<vmem>>, vector<6x1xf32>,
    } else {
    }
    %c0 = arith.constant 0 : index
    %c0_1 = arith.constant 0 : index
    %3 = vector.load %arg3[%c0, %c0_1] : memref<2x128xbf16, #tpu.memory_space<vmem>>, vector<2x128xbf16>
    %4 = arith.extf %3 : vector<2x128xbf16> to vector<2x128xf32>
    %c0_2 = arith.constant 0 : index
    %c0_3 = arith.constant 0 : index
    %5 = vector.load %arg2[%c0_2, %c0_3] : memref<2x128xbf16, #tpu.memory_space<vmem>>, vector<2x128xbf16>
    %6 = arith.extf %5 : vector<2x128xbf16> to vector<2x128xf32>
    %c0_4 = arith.constant 0 : index
    %c0_5 = arith.constant 0 : index
    %7 = vector.load %arg4[%c0_4, %c0_5] : memref<6x128xbf16, #tpu.memory_space<vmem>>, vector<6x128xbf16>
    %8 = arith.extf %7 : vector<6x128xbf16> to vector<6x128xf32>
    %cst = arith.constant 0.000000e+00 : f32
    %9 = vector.broadcast %cst : f32 to vector<2x128xf32>
    %10 = arith.maximumf %6, %9 : vector<2x128xf32>
    %11 = math.absf %6 : vector<2x128xf32>
    %cst_6 = arith.constant 0.000000e+00 : f32
    %12 = vector.broadcast %cst_6 : f32 to vector<2x128xf32>
    %13 = arith.subf %12, %11 : vector<2x128xf32>
    %14 = math.exp %13 : vector<2x128xf32>
    %cst_7 = arith.constant 1.000000e+00 : f32
    %15 = vector.broadcast %cst_7 : f32 to vector<2x128xf32>
    %16 = arith.addf %15, %14 : vector<2x128xf32>
    %17 = math.log %16 : vector<2x128xf32>
    %18 = arith.addf %10, %17 : vector<2x128xf32>
    %cst_8 = arith.constant 2.000000e+00 : f32
    %19 = vector.broadcast %cst_8 : f32 to vector<2x128xf32>
    %20 = arith.mulf %19, %6 : vector<2x128xf32>
    %21 = arith.subf %18, %20 : vector<2x128xf32>
    %22 = arith.mulf %4, %21 : vector<2x128xf32>
    %23 = arith.addf %18, %22 : vector<2x128xf32>
    %c0_9 = arith.constant 0 : index
    %c0_10 = arith.constant 0 : index
    %24 = vector.load %arg8[%c0_9, %c0_10] : memref<2x1xf32, #tpu.memory_space<vmem>>, vector<2x1xf32>
    %cst_11 = arith.constant dense<0.000000e+00> : vector<2xf32>
    %25 = vector.multi_reduction <add>, %23, %cst_11 [1] : vector<2x128xf32> to vector<2xf32>
    %26 = vector.shape_cast %25 : vector<2xf32> to vector<2x1xf32>
    %27 = arith.addf %24, %26 : vector<2x1xf32>
    %c0_12 = arith.constant 0 : index
    %c0_13 = arith.constant 0 : index
    %28 = vector.load %arg8[%c0_12, %c0_13] : memref<2x1xf32, #tpu.memory_space<vmem>>, vector<2x1xf32>
    tpu.vector_store %arg8[%c0_12, %c0_13], %27 {strides = array<i32>} : memref<2x1xf32, #tpu.memory_space<vmem>>, vector<2x1xf32>,
    %c0_14 = arith.constant 0 : index
    %c0_15 = arith.constant 0 : index
    %29 = vector.load %arg9[%c0_14, %c0_15] : memref<2x1xf32, #tpu.memory_space<vmem>>, vector<2x1xf32>
    %cst_16 = arith.constant dense<0.000000e+00> : vector<2xf32>
    %30 = vector.multi_reduction <add>, %4, %cst_16 [1] : vector<2x128xf32> to vector<2xf32>
    %31 = vector.shape_cast %30 : vector<2xf32> to vector<2x1xf32>
    %32 = arith.addf %29, %31 : vector<2x1xf32>
    %c0_17 = arith.constant 0 : index
    %c0_18 = arith.constant 0 : index
    %33 = vector.load %arg9[%c0_17, %c0_18] : memref<2x1xf32, #tpu.memory_space<vmem>>, vector<2x1xf32>
    tpu.vector_store %arg9[%c0_17, %c0_18], %32 {strides = array<i32>} : memref<2x1xf32, #tpu.memory_space<vmem>>, vector<2x1xf32>,
    %34 = tpu.concatenate %4, %4, %4 in 0 : vector<2x128xf32>, vector<2x128xf32>, vector<2x128xf32> -> vector<6x128xf32>
    %cst_19 = arith.constant 0.000000e+00 : f32
    %35 = vector.broadcast %cst_19 : f32 to vector<6x128xf32>
    %36 = arith.maximumf %8, %35 : vector<6x128xf32>
    %37 = math.absf %8 : vector<6x128xf32>
    %cst_20 = arith.constant 0.000000e+00 : f32
    %38 = vector.broadcast %cst_20 : f32 to vector<6x128xf32>
    %39 = arith.subf %38, %37 : vector<6x128xf32>
    %40 = math.exp %39 : vector<6x128xf32>
    %cst_21 = arith.constant 1.000000e+00 : f32
    %41 = vector.broadcast %cst_21 : f32 to vector<6x128xf32>
    %42 = arith.addf %41, %40 : vector<6x128xf32>
    %43 = math.log %42 : vector<6x128xf32>
    %44 = arith.addf %36, %43 : vector<6x128xf32>
    %45 = arith.mulf %34, %8 : vector<6x128xf32>
    %46 = arith.subf %44, %45 : vector<6x128xf32>
    %c0_22 = arith.constant 0 : index
    %c0_23 = arith.constant 0 : index
    %47 = vector.load %arg10[%c0_22, %c0_23] : memref<6x1xf32, #tpu.memory_space<vmem>>, vector<6x1xf32>
    %cst_24 = arith.constant dense<0.000000e+00> : vector<6xf32>
    %48 = vector.multi_reduction <add>, %46, %cst_24 [1] : vector<6x128xf32> to vector<6xf32>
    %49 = vector.shape_cast %48 : vector<6xf32> to vector<6x1xf32>
    %50 = arith.addf %47, %49 : vector<6x1xf32>
    %c0_25 = arith.constant 0 : index
    %c0_26 = arith.constant 0 : index
    %51 = vector.load %arg10[%c0_25, %c0_26] : memref<6x1xf32, #tpu.memory_space<vmem>>, vector<6x1xf32>
    tpu.vector_store %arg10[%c0_25, %c0_26], %50 {strides = array<i32>} : memref<6x1xf32, #tpu.memory_space<vmem>>, vector<6x1xf32>,
    %c3_i32 = arith.constant 3 : i32
    %52 = arith.cmpi eq, %arg1, %c3_i32 : i32
    %53 = arith.extui %52 : i1 to i32
    %c0_i32_27 = arith.constant 0 : i32
    %54 = arith.cmpi ne, %53, %c0_i32_27 : i32
    scf.if %54 {
      %c0_28 = arith.constant 0 : index
      %c0_29 = arith.constant 0 : index
      %55 = vector.load %arg8[%c0_28, %c0_29] : memref<2x1xf32, #tpu.memory_space<vmem>>, vector<2x1xf32>
      %56 = vector.shape_cast %55 : vector<2x1xf32> to vector<1x2x1xf32>
      %c0_30 = arith.constant 0 : index
      %c0_31 = arith.constant 0 : index
      %c0_32 = arith.constant 0 : index
      %57 = vector.load %arg5[%c0_30, %c0_31, %c0_32] : memref<1x2x1xf32, #tpu.memory_space<vmem>>, vector<1x2x1xf32>
      tpu.vector_store %arg5[%c0_30, %c0_31, %c0_32], %56 {strides = array<i32>} : memref<1x2x1xf32, #tpu.memory_space<vmem>>, vector<1x2x1xf32>,
      %c0_33 = arith.constant 0 : index
      %c0_34 = arith.constant 0 : index
      %58 = vector.load %arg9[%c0_33, %c0_34] : memref<2x1xf32, #tpu.memory_space<vmem>>, vector<2x1xf32>
      %59 = vector.shape_cast %58 : vector<2x1xf32> to vector<1x2x1xf32>
      %c0_35 = arith.constant 0 : index
      %c0_36 = arith.constant 0 : index
      %c0_37 = arith.constant 0 : index
      %60 = vector.load %arg6[%c0_35, %c0_36, %c0_37] : memref<1x2x1xf32, #tpu.memory_space<vmem>>, vector<1x2x1xf32>
      tpu.vector_store %arg6[%c0_35, %c0_36, %c0_37], %59 {strides = array<i32>} : memref<1x2x1xf32, #tpu.memory_space<vmem>>, vector<1x2x1xf32>,
      %c0_38 = arith.constant 0 : index
      %c0_39 = arith.constant 0 : index
      %61 = vector.load %arg10[%c0_38, %c0_39] : memref<6x1xf32, #tpu.memory_space<vmem>>, vector<6x1xf32>
      %62 = vector.shape_cast %61 : vector<6x1xf32> to vector<1x6x1xf32>
      %c0_40 = arith.constant 0 : index
      %c0_41 = arith.constant 0 : index
      %c0_42 = arith.constant 0 : index
      %63 = vector.load %arg7[%c0_40, %c0_41, %c0_42] : memref<1x6x1xf32, #tpu.memory_space<vmem>>, vector<1x6x1xf32>
      tpu.vector_store %arg7[%c0_40, %c0_41, %c0_42], %62 {strides = array<i32>} : memref<1x6x1xf32, #tpu.memory_space<vmem>>, vector<1x6x1xf32>,
    } else {
    }
    return
  }
  func.func @transform_0(%arg0: i32, %arg1: i32) -> (i32, i32) {
    %c4_i32 = arith.constant 4 : i32
    %0 = arith.muli %arg0, %c4_i32 : i32
    %1 = arith.addi %0, %arg1 : i32
    %c0_i32 = arith.constant 0 : i32
    %c0_i32_0 = arith.constant 0 : i32
    return %c0_i32, %1 : i32, i32
  }
  func.func @transform_1(%arg0: i32, %arg1: i32) -> (i32, i32) {
    %c4_i32 = arith.constant 4 : i32
    %0 = arith.muli %arg0, %c4_i32 : i32
    %1 = arith.addi %0, %arg1 : i32
    %c0_i32 = arith.constant 0 : i32
    %c0_i32_0 = arith.constant 0 : i32
    return %c0_i32, %1 : i32, i32
  }
  func.func @transform_2(%arg0: i32, %arg1: i32) -> (i32, i32) {
    %c4_i32 = arith.constant 4 : i32
    %0 = arith.muli %arg0, %c4_i32 : i32
    %1 = arith.addi %0, %arg1 : i32
    %c0_i32 = arith.constant 0 : i32
    %c0_i32_0 = arith.constant 0 : i32
    return %c0_i32, %1 : i32, i32
  }
  func.func @transform_3(%arg0: i32, %arg1: i32) -> (i32, i32, i32) {
    %c0_i32 = arith.constant 0 : i32
    %c0_i32_0 = arith.constant 0 : i32
    %c0_i32_1 = arith.constant 0 : i32
    return %arg0, %c0_i32, %c0_i32_0 : i32, i32, i32
  }
  func.func @transform_4(%arg0: i32, %arg1: i32) -> (i32, i32, i32) {
    %c0_i32 = arith.constant 0 : i32
    %c0_i32_0 = arith.constant 0 : i32
    %c0_i32_1 = arith.constant 0 : i32
    return %arg0, %c0_i32, %c0_i32_0 : i32, i32, i32
  }
  func.func @transform_5(%arg0: i32, %arg1: i32) -> (i32, i32, i32) {
    %c0_i32 = arith.constant 0 : i32
    %c0_i32_0 = arith.constant 0 : i32
    %c0_i32_1 = arith.constant 0 : i32
    return %arg0, %c0_i32, %c0_i32_0 : i32, i32, i32
  }
}

</mosaic_0001>

<llo_original>
// kernel: tpu_custom_call.1
$region0: #{tpu_custom_call.1}
  #allocation0 [shape = 'u32[]', space=smem, size = 0x4, offset = 0x4, fixed_abs, tag = 'smem constant byte address 0x4 - core index']
  #allocation1 [shape = 'u32[72,128]{1,0:T(1,128)}', space=vmem, size = 0x9000, scoped, tag = 'internal scratch']
  #allocation2 [shape = 'f32[2,1]{1,0:T(2,128)}', space=vmem, size = 0x400, scoped, tag = 'scratch operand']
  #allocation3 [shape = 'f32[2,1]{1,0:T(2,128)}', space=vmem, size = 0x400, scoped, tag = 'scratch operand']
  #allocation4 [shape = 'f32[6,1]{1,0:T(8,128)}', space=vmem, size = 0x1000, scoped, tag = 'scratch operand']
  %s0 = inlined_call_operand.hbm [shape: bf16[2,1024], index: 0, kind: input, shape index: {}]
  %s1 = inlined_call_operand.hbm [shape: bf16[2,1024], index: 1, kind: input, shape index: {}]
  %s2 = inlined_call_operand.hbm [shape: bf16[6,1024], index: 2, kind: input, shape index: {}]
  %s3 = inlined_call_operand.vmem [shape: f32[2,2,1], index: 3, kind: output, shape index: {0}]
  %s4 = inlined_call_operand.vmem [shape: f32[2,2,1], index: 4, kind: output, shape index: {1}]
  %s5 = inlined_call_operand.vmem [shape: f32[2,6,1], index: 5, kind: output, shape index: {2}]
  %6 = xla_tuple %s3, %s4, %s5
  %s7 = sld [smem:[#allocation0]]
  $region81: #{tpu_custom_call.1} parent=0
    _
  %s9 = ssub.s32 1, %s7
  %s10 = scalar_select 0, %s9, %s7
  $region1: #{tpu_custom_call.1} parent=0
    #allocation5 [shape = 'u8[1024]{0}', space=vmem, size = 0x400, scoped, tag = 'input window, operand 0']
    #allocation6 [shape = 's32[2]{0}', space=sflag, size = 0x8, scoped, tag = 'scoped memory for tpu_custom_call.1']
    #allocation7 [shape = 'u8[1024]{0}', space=vmem, size = 0x400, scoped, tag = 'input window, operand 1']
    #allocation8 [shape = 's32[2]{0}', space=sflag, size = 0x8, scoped, tag = 'scoped memory for tpu_custom_call.1']
    #allocation9 [shape = 'u8[4096]{0}', space=vmem, size = 0x1000, scoped, tag = 'input window, operand 2']
    %11 = vsyncpa [#allocation6], 0
    %s12 = scalar_lea.sflag [#allocation6], 1
    %13 = vsyncpa %s12, 0
    %14 = vsyncpa [#allocation8], 0
    %s15 = scalar_lea.sflag [#allocation8], 1
    %16 = vsyncpa %s15, 0
    loop: start=0, step=1, limit=10
    $region2: #{tpu_custom_call.1} parent=1 // loop_pre_header
      _
    $region3: #{tpu_custom_call.1} parent=1 // loop_header
      %s18 = sphi 0, %s22
      %p19 = scmp.ge.s32.totalorder %s18, 10
      %s25 = sphi 0, %s37
      %s26 = sphi 0, %s33
      %s27 = sphi 0, %s25
      %s28 = sphi 0, %s26
      %s29 = sphi 0, %s27
      %s30 = sphi 0, %s28
      %s44 = sphi 0, %s46
      %s47 = sphi 0, %s44
      %s48 = sphi 0, %s47
      %s64 = sphi 0, %s48
      %s74 = sphi 0, %s76
      %s77 = sphi 0, %s74
      %s78 = sphi 0, %s77
      %s94 = sphi 0, %s78
      %s104 = sphi 0, %s106
      %s107 = sphi 0, %s104
      %s108 = sphi 0, %s107
      %s124 = sphi 0, %s108
      %s130 = sphi 0, %s132
      %s133 = sphi 0, %s130
      %s134 = sphi 0, %s133
      %s150 = sphi 0, %s134
      %s156 = sphi 0, %s158
      %s159 = sphi 0, %s156
      %s160 = sphi 0, %s159
      %s176 = sphi 0, %s160
      %s182 = sphi 0, %s184
      %s185 = sphi 0, %s182
      %s186 = sphi 0, %s185
      %s202 = sphi 0, %s186
    $region4: #{tpu_custom_call.1} parent=1 // loop_header_branch
      %21 = sbr.rel (%p19) target = $region8
    $region5: #{tpu_custom_call.1} parent=1 // loop_body
      %s23 = ssub.s32 %s18, 1
      %s24 = ssub.s32 %s18, 2
      %s31 = sadd.s32 1, %s26
      %p32 = scmp.ge.s32.totalorder %s31, 4
      %s33 = scalar_select %p32, 0, %s31
      %s34 = sadd.s32 1, %s25
      %s35 = scalar_select %p32, %s34, %s25
      %p36 = scmp.ge.s32.totalorder %s35, 2
      %s37 = scalar_select %p36, 0, %s35
      %s38 = smul.u32 %s25, 4
      %s39 = sadd.s32 %s38, %s26
      %s40 = smul.u32 %s37, 4
      %s41 = sadd.s32 %s40, %s33
      %s42 = ssub.s32 %s39, %s41
      %p43 = scmp.eq.s32.totalorder %s42, 0
      %s45 = sadd.s32 %s44, 1
      %s46 = scalar_select %p43, %s44, %s45
      %p49 = pneg %p43
      %p50 = scmp.eq.s32.totalorder %s18, 7
      %p51 = por %p49, %p50
      %p52 = scmp.ne.s32.totalorder %s44, %s47
      %p53 = scmp.eq.s32.totalorder %s18, 0
      %p54 = por %p52, %p53
      %p55 = scmp.ne.s32.totalorder %s44, %s47
      %p56 = scmp.eq.s32.totalorder %s23, 7
      %p57 = por %p55, %p56
      %p58 = scmp.ne.s32.totalorder %s47, %s48
      %p59 = scmp.eq.s32.totalorder %s23, 0
      %p60 = por %p58, %p59
      %p61 = scmp.ne.s32.totalorder %s47, %s48
      %p62 = scmp.eq.s32.totalorder %s24, 7
      %p63 = por %p61, %p62
      %p65 = scmp.ne.s32.totalorder %s48, %s64
      %p66 = scmp.eq.s32.totalorder %s24, 0
      %p67 = por %p65, %p66
      %s68 = smul.u32 %s25, 4
      %s69 = sadd.s32 %s68, %s26
      %s70 = smul.u32 %s37, 4
      %s71 = sadd.s32 %s70, %s33
      %s72 = ssub.s32 %s69, %s71
      %p73 = scmp.eq.s32.totalorder %s72, 0
      %s75 = sadd.s32 %s74, 1
      %s76 = scalar_select %p73, %s74, %s75
      %p79 = pneg %p73
      %p80 = scmp.eq.s32.totalorder %s18, 7
      %p81 = por %p79, %p80
      %p82 = scmp.ne.s32.totalorder %s74, %s77
      %p83 = scmp.eq.s32.totalorder %s18, 0
      %p84 = por %p82, %p83
      %p85 = scmp.ne.s32.totalorder %s74, %s77
      %p86 = scmp.eq.s32.totalorder %s23, 7
      %p87 = por %p85, %p86
      %p88 = scmp.ne.s32.totalorder %s77, %s78
      %p89 = scmp.eq.s32.totalorder %s23, 0
      %p90 = por %p88, %p89
      %p91 = scmp.ne.s32.totalorder %s77, %s78
      %p92 = scmp.eq.s32.totalorder %s24, 7
      %p93 = por %p91, %p92
      %p95 = scmp.ne.s32.totalorder %s78, %s94
      %p96 = scmp.eq.s32.totalorder %s24, 0
      %p97 = por %p95, %p96
      %s98 = smul.u32 %s25, 4
      %s99 = sadd.s32 %s98, %s26
      %s100 = smul.u32 %s37, 4
      %s101 = sadd.s32 %s100, %s33
      %s102 = ssub.s32 %s99, %s101
      %p103 = scmp.eq.s32.totalorder %s102, 0
      %s105 = sadd.s32 %s104, 1
      %s106 = scalar_select %p103, %s104, %s105
      %p109 = pneg %p103
      %p110 = scmp.eq.s32.totalorder %s18, 7
      %p111 = por %p109, %p110
      %p112 = scmp.ne.s32.totalorder %s104, %s107
      %p113 = scmp.eq.s32.totalorder %s18, 0
      %p114 = por %p112, %p113
      %p115 = scmp.ne.s32.totalorder %s104, %s107
      %p116 = scmp.eq.s32.totalorder %s23, 7
      %p117 = por %p115, %p116
      %p118 = scmp.ne.s32.totalorder %s107, %s108
      %p119 = scmp.eq.s32.totalorder %s23, 0
      %p120 = por %p118, %p119
      %p121 = scmp.ne.s32.totalorder %s107, %s108
      %p122 = scmp.eq.s32.totalorder %s24, 7
      %p123 = por %p121, %p122
      %p125 = scmp.ne.s32.totalorder %s108, %s124
      %p126 = scmp.eq.s32.totalorder %s24, 0
      %p127 = por %p125, %p126
      %s128 = ssub.s32 %s25, %s37
      %p129 = scmp.eq.s32.totalorder %s128, 0
      %s131 = sadd.s32 %s130, 1
      %s132 = scalar_select %p129, %s130, %s131
      %p135 = pneg %p129
      %p136 = scmp.eq.s32.totalorder %s18, 7
      %p137 = por %p135, %p136
      %p138 = scmp.ne.s32.totalorder %s130, %s133
      %p139 = scmp.eq.s32.totalorder %s18, 0
      %p140 = por %p138, %p139
      %p141 = scmp.ne.s32.totalorder %s130, %s133
      %p142 = scmp.eq.s32.totalorder %s23, 7
      %p143 = por %p141, %p142
      %p144 = scmp.ne.s32.totalorder %s133, %s134
      %p145 = scmp.eq.s32.totalorder %s23, 0
      %p146 = por %p144, %p145
      %p147 = scmp.ne.s32.totalorder %s133, %s134
      %p148 = scmp.eq.s32.totalorder %s24, 7
      %p149 = por %p147, %p148
      %p151 = scmp.ne.s32.totalorder %s134, %s150
      %p152 = scmp.eq.s32.totalorder %s24, 0
      %p153 = por %p151, %p152
      %s154 = ssub.s32 %s25, %s37
      %p155 = scmp.eq.s32.totalorder %s154, 0
      %s157 = sadd.s32 %s156, 1
      %s158 = scalar_select %p155, %s156, %s157
      %p161 = pneg %p155
      %p162 = scmp.eq.s32.totalorder %s18, 7
      %p163 = por %p161, %p162
      %p164 = scmp.ne.s32.totalorder %s156, %s159
      %p165 = scmp.eq.s32.totalorder %s18, 0
      %p166 = por %p164, %p165
      %p167 = scmp.ne.s32.totalorder %s156, %s159
      %p168 = scmp.eq.s32.totalorder %s23, 7
      %p169 = por %p167, %p168
      %p170 = scmp.ne.s32.totalorder %s159, %s160
      %p171 = scmp.eq.s32.totalorder %s23, 0
      %p172 = por %p170, %p171
      %p173 = scmp.ne.s32.totalorder %s159, %s160
      %p174 = scmp.eq.s32.totalorder %s24, 7
      %p175 = por %p173, %p174
      %p177 = scmp.ne.s32.totalorder %s160, %s176
      %p178 = scmp.eq.s32.totalorder %s24, 0
      %p179 = por %p177, %p178
      %s180 = ssub.s32 %s25, %s37
      %p181 = scmp.eq.s32.totalorder %s180, 0
      %s183 = sadd.s32 %s182, 1
      %s184 = scalar_select %p181, %s182, %s183
      %p187 = pneg %p181
      %p188 = scmp.eq.s32.totalorder %s18, 7
      %p189 = por %p187, %p188
      %p190 = scmp.ne.s32.totalorder %s182, %s185
      %p191 = scmp.eq.s32.totalorder %s18, 0
      %p192 = por %p190, %p191
      %p193 = scmp.ne.s32.totalorder %s182, %s185
      %p194 = scmp.eq.s32.totalorder %s23, 7
      %p195 = por %p193, %p194
      %p196 = scmp.ne.s32.totalorder %s185, %s186
      %p197 = scmp.eq.s32.totalorder %s23, 0
      %p198 = por %p196, %p197
      %p199 = scmp.ne.s32.totalorder %s185, %s186
      %p200 = scmp.eq.s32.totalorder %s24, 7
      %p201 = por %p199, %p200
      %p203 = scmp.ne.s32.totalorder %s186, %s202
      %p204 = scmp.eq.s32.totalorder %s24, 0
      %p205 = por %p203, %p204
      %p206 = scmp.le.s32.totalorder 1, %s18
      %p207 = scmp.lt.s32.totalorder %s18, 9
      %p208 = pnand %p206, %p207
      %p209 = pneg %p208
      // Predicated region
      $region9: #{tpu_custom_call.1} parent=5 // pred_check
        _
      $region10: #{tpu_custom_call.1} parent=5 // pred_check_branch
        %211 = sbr.rel (%p208) target = $region12
      $region11: #{tpu_custom_call.1} parent=5 // pred_region
        %s212 = ssub.s32 %s18, 1
      $region12: #{tpu_custom_call.1} parent=5 // pred_fallthru
        _
      %p213 = scmp.lt.s32.totalorder %s18, 8
      // Predicated region
      $region13: #{tpu_custom_call.1} parent=5 // pred_check
        %p214 = pneg %p213
      $region14: #{tpu_custom_call.1} parent=5 // pred_check_branch
        %216 = sbr.rel (%p214) target = $region16
      $region15: #{tpu_custom_call.1} parent=5 // pred_region
        // Predicated region
        $region17: #{tpu_custom_call.1} parent=15 // pred_check
          %p217 = pneg %p54
        $region18: #{tpu_custom_call.1} parent=15 // pred_check_branch
          %219 = sbr.rel (%p217) target = $region20
        $region19: #{tpu_custom_call.1} parent=15 // pred_region
          %s220 = sand.u32 %s44, 1
          %s221 = scalar_lea.sflag [#allocation6], %s220
          %s222 = sand.u32 %s44, 1
          %s223 = scalar_lea.vmem [#allocation5], %s222
          %s224 = smul.u32 %s25, 4
          %s225 = sadd.s32 %s224, %s26
          %227 = vsyncadd %s221, 0
          %s228 = scalar_lea.hbm %s0, %s225
          %s230 = sshll.u32 %s228, 4
          %s231 = int_to_ptr.hbm [resolvable:$true] %s230
          %s232 = sshll.u32 %s223, 4
          %s233 = int_to_ptr.vmem [resolvable:$true] %s232
          %235 = dma.hbm_to_vmem [thread:$0]  %s231, 16, %s233, %s221
        $region20: #{tpu_custom_call.1} parent=15 // pred_fallthru
          _
        // Predicated region
        $region21: #{tpu_custom_call.1} parent=15 // pred_check
          %p236 = pneg %p84
        $region22: #{tpu_custom_call.1} parent=15 // pred_check_branch
          %238 = sbr.rel (%p236) target = $region24
        $region23: #{tpu_custom_call.1} parent=15 // pred_region
          %s239 = sand.u32 %s18, 1
          %s240 = scalar_lea.sflag [#allocation8], %s239
          %s241 = sand.u32 %s74, 1
          %s242 = scalar_lea.vmem [#allocation7], %s241
          %s243 = smul.u32 %s25, 4
          %s244 = sadd.s32 %s243, %s26
          %246 = vsyncadd %s240, 0
          %s247 = scalar_lea.hbm %s1, %s244
          %s249 = sshll.u32 %s247, 4
          %s250 = int_to_ptr.hbm [resolvable:$true] %s249
          %s251 = sshll.u32 %s242, 4
          %s252 = int_to_ptr.vmem [resolvable:$true] %s251
          %254 = dma.hbm_to_vmem [thread:$0]  %s250, 16, %s252, %s240
        $region24: #{tpu_custom_call.1} parent=15 // pred_fallthru
          _
        // Predicated region
        $region25: #{tpu_custom_call.1} parent=15 // pred_check
          %p255 = pneg %p114
        $region26: #{tpu_custom_call.1} parent=15 // pred_check_branch
          %257 = sbr.rel (%p255) target = $region28
        $region27: #{tpu_custom_call.1} parent=15 // pred_region
          %s258 = sand.u32 %s18, 1
          %s259 = scalar_lea.sflag [#allocation8], %s258
          %s260 = sand.u32 %s104, 1
          %s261 = smul.addr %s260, 4
          %s262 = scalar_lea.vmem [#allocation9], %s261
          %s263 = smul.u32 %s25, 4
          %s264 = sadd.s32 %s263, %s26
          %266 = vsyncadd %s259, 0
          %s267 = smul.addr %s264, 4
          %s268 = scalar_lea.hbm %s2, %s267
          %s270 = sshll.u32 %s268, 4
          %s271 = int_to_ptr.hbm [resolvable:$true] %s270
          %s272 = sshll.u32 %s262, 4
          %s273 = int_to_ptr.vmem [resolvable:$true] %s272
          %275 = dma.hbm_to_vmem [thread:$0]  %s271, 64, %s273, %s259
        $region28: #{tpu_custom_call.1} parent=15 // pred_fallthru
          _
      $region16: #{tpu_custom_call.1} parent=5 // pred_fallthru
        _
      %p276 = scmp.le.s32.totalorder 1, %s18
      %p277 = scmp.lt.s32.totalorder %s18, 9
      %p278 = pnand %p276, %p277
      %p279 = pneg %p278
      // Predicated region
      $region29: #{tpu_custom_call.1} parent=5 // pred_check
        _
      $region30: #{tpu_custom_call.1} parent=5 // pred_check_branch
        %281 = sbr.rel (%p278) target = $region32
      $region31: #{tpu_custom_call.1} parent=5 // pred_region
        %s282 = ssub.s32 %s18, 1
        %s283 = sand.u32 %s47, 1
        %s284 = scalar_lea.sflag [#allocation6], %s283
        %s285 = sand.u32 %s47, 1
        %s286 = scalar_lea.vmem [#allocation5], %s285
        // Predicated region
        $region33: #{tpu_custom_call.1} parent=31 // pred_check
          %p287 = pneg %p60
        $region34: #{tpu_custom_call.1} parent=31 // pred_check_branch
          %289 = sbr.rel (%p287) target = $region36
        $region35: #{tpu_custom_call.1} parent=31 // pred_region
          %291 = dma.done %s284, 16
        $region36: #{tpu_custom_call.1} parent=31 // pred_fallthru
          _
        %s292 = sand.u32 %s23, 1
        %s293 = scalar_lea.sflag [#allocation8], %s292
        %s294 = sand.u32 %s77, 1
        %s295 = scalar_lea.vmem [#allocation7], %s294
        // Predicated region
        $region37: #{tpu_custom_call.1} parent=31 // pred_check
          %p296 = pneg %p90
        $region38: #{tpu_custom_call.1} parent=31 // pred_check_branch
          %298 = sbr.rel (%p296) target = $region40
        $region39: #{tpu_custom_call.1} parent=31 // pred_region
          %300 = dma.done %s293, 16
        $region40: #{tpu_custom_call.1} parent=31 // pred_fallthru
          _
        %s301 = sand.u32 %s23, 1
        %s302 = scalar_lea.sflag [#allocation8], %s301
        %s303 = sand.u32 %s107, 1
        %s304 = smul.addr %s303, 4
        %s305 = scalar_lea.vmem [#allocation9], %s304
        // Predicated region
        $region41: #{tpu_custom_call.1} parent=31 // pred_check
          %p306 = pneg %p120
        $region42: #{tpu_custom_call.1} parent=31 // pred_check_branch
          %308 = sbr.rel (%p306) target = $region44
        $region43: #{tpu_custom_call.1} parent=31 // pred_region
          %310 = dma.done %s302, 64
        $region44: #{tpu_custom_call.1} parent=31 // pred_fallthru
          _
        %s311 = sand.u32 %s47, 1
        %s312 = scalar_lea.sflag [#allocation6], %s311
        %s313 = sand.u32 %s47, 1
        %s314 = scalar_lea.vmem [#allocation5], %s313
        %p315 = pneg %p60
        %p316 = pneg %p57
        %s317 = sand.u32 %s23, 1
        %s318 = scalar_lea.sflag [#allocation8], %s317
        %s319 = sand.u32 %s77, 1
        %s320 = scalar_lea.vmem [#allocation7], %s319
        %p321 = pneg %p90
        %p322 = pneg %p87
        %s323 = sand.u32 %s23, 1
        %s324 = scalar_lea.sflag [#allocation8], %s323
        %s325 = sand.u32 %s107, 1
        %s326 = smul.addr %s325, 4
        %s327 = scalar_lea.vmem [#allocation9], %s326
        %p328 = pneg %p120
        %p329 = pneg %p117
        %p330 = pneg %p146
        %p331 = pneg %p143
        %p332 = scmp.lt.s32.totalorder %s27, 1
        %s333 = scalar_select %p332, %s27, 1
        %s334 = smul.addr %s333, 2
        %s335 = scalar_lea.vmem %s3, %s334
        %p336 = pneg %p172
        %p337 = pneg %p169
        %p338 = scmp.lt.s32.totalorder %s27, 1
        %s339 = scalar_select %p338, %s27, 1
        %s340 = smul.addr %s339, 2
        %s341 = scalar_lea.vmem %s4, %s340
        %p342 = pneg %p198
        %p343 = pneg %p195
        %p344 = scmp.lt.s32.totalorder %s27, 1
        %s345 = scalar_select %p344, %s27, 1
        %s346 = smul.addr %s345, 8
        %s347 = scalar_lea.vmem %s5, %s346
        %s348 = smul.u32 %s27, 4
        %s349 = sadd.s32 %s348, %s28
        %s350 = smul.u32 %s27, 4
        %s351 = sadd.s32 %s350, %s28
        %s352 = smul.u32 %s27, 4
        %s353 = sadd.s32 %s352, %s28
        %p354 = scmp.lt.s32.totalorder %s27, 1
        %s355 = scalar_select %p354, %s27, 1
        %s356 = smul.addr %s355, 2
        %s357 = scalar_lea.vmem %s3, %s356
        %p358 = scmp.lt.s32.totalorder %s27, 1
        %s359 = scalar_select %p358, %s27, 1
        %s360 = smul.addr %s359, 2
        %s361 = scalar_lea.vmem %s4, %s360
        %p362 = scmp.lt.s32.totalorder %s27, 1
        %s363 = scalar_select %p362, %s27, 1
        %s364 = smul.addr %s363, 8
        %s365 = scalar_lea.vmem %s5, %s364
        %p366 = scmp.eq.s32.totalorder %s28, 0
        // Predicated region
        $region45: #{tpu_custom_call.1} parent=31 // pred_check
          %p367 = pneg %p366
        $region46: #{tpu_custom_call.1} parent=31 // pred_check_branch
          %369 = sbr.rel (%p367) target = $region48
        $region47: #{tpu_custom_call.1} parent=31 // pred_region
          %vm370 = vcmask 1024
          %371 = vst.msk [vmem:[#allocation2] sm:$0x3] %vm370, 0.0
          %372 = vst.msk [vmem:[#allocation3] sm:$0x3] %vm370, 0.0
          %vm373 = vcmask 5120
          %374 = vst.msk [vmem:[#allocation4] sm:$0x3f] %vm373, 0.0
        $region48: #{tpu_custom_call.1} parent=31 // pred_fallthru
          _
        %v375 = vld [vmem:[%s295] sm:$0x1]
        %v376 = vunpack.c.l.bf16 %v375
        %v377 = vld [vmem:[%s286] sm:$0x1]
        %v378 = vunpack.c.l.bf16 %v377
        %v379 = vld [vmem:[%s305] sm:$0x7]
        %v380 = vunpack.c.l.bf16 %v379
        %v381 = vmax.f32 %v378, 0.0
        %v382 = vand.u32 2147483647, %v378
        %v383 = vsub.f32 0.0, %v382
        %v384 = vmul.f32 %v383, 1.442695
        %v385 = vpow.pop %v384
        %v386 = vadd.f32 %v385, 1.0
        %v387 = vlog2.pop %v386
        %v388 = vmul.f32 %v387, 0.6931472
        %v389 = vadd.f32 %v381, %v388
        %v390 = vmul.f32 %v378, 2.0
        %v391 = vsub.f32 %v389, %v390
        %v392 = vmul.f32 %v376, %v391
        %v393 = vadd.f32 %v389, %v392
        %v394 = vld [vmem:[#allocation2] sm:$0x3]
        %vm395 = vcmask 1041408
        %v396 = vsel %vm395, %v393, 0.0
        %397 = vadd.xlane.f32.xlu0 %v396
        %v398 = vpop.xlane.xlu0 %397
        %v399 = vadd.f32 %v394, %v398
        %vm400 = vcmask 1024
        %401 = vst.msk [vmem:[#allocation2] sm:$0x3] %vm400, %v399
        %v402 = vld [vmem:[#allocation3] sm:$0x3]
        %v403 = vsel %vm395, %v376, 0.0
        %404 = vadd.xlane.f32.xlu0 %v403
        %v405 = vpop.xlane.xlu0 %404
        %v406 = vadd.f32 %v402, %v405
        %407 = vst.msk [vmem:[#allocation3] sm:$0x3] %vm400, %v406
        %s409 = scalar_lea.vmem [#allocation1], 1
        %410 = vst [vmem:[%s409] ss:$4 sm:$0xff] %v376
        %v411 = vld.sshfl [vmem:[#allocation1] sm:$0xff pattern:$0x73625140]
        %s413 = scalar_lea.vmem [#allocation1], 2
        %414 = vst [vmem:[%s413] ss:$4 sm:$0xff] %v376
        %v415 = vld.sshfl [vmem:[#allocation1] sm:$0xff pattern:$0x73625140]
        %v417 = vsel %vm395, %v376, %v411
        %vm418 = vcmask 1043456
        %v419 = vsel %vm418, %v417, %v415
        %v420 = vmax.f32 %v380, 0.0
        %v421 = vand.u32 2147483647, %v380
        %v422 = vsub.f32 0.0, %v421
        %v423 = vmul.f32 %v422, 1.442695
        %v424 = vpow.pop %v423
        %v425 = vadd.f32 %v424, 1.0
        %v426 = vlog2.pop %v425
        %v427 = vmul.f32 %v426, 0.6931472
        %v428 = vadd.f32 %v420, %v427
        %v429 = vmul.f32 %v419, %v380
        %v430 = vsub.f32 %v428, %v429
        %v431 = vld [vmem:[#allocation4] sm:$0x3f]
        %vm432 = vcmask 1045504
        %v433 = vsel %vm432, %v430, 0.0
        %434 = vadd.xlane.f32.xlu0 %v433
        %v435 = vpop.xlane.xlu0 %434
        %v436 = vadd.f32 %v431, %v435
        %vm437 = vcmask 5120
        %438 = vst.msk [vmem:[#allocation4] sm:$0x3f] %vm437, %v436
        %p439 = scmp.eq.s32.totalorder %s28, 3
        // Predicated region
        $region49: #{tpu_custom_call.1} parent=31 // pred_check
          %p440 = pneg %p439
        $region50: #{tpu_custom_call.1} parent=31 // pred_check_branch
          %442 = sbr.rel (%p440) target = $region52
        $region51: #{tpu_custom_call.1} parent=31 // pred_region
          %v443 = vld [vmem:[#allocation2] sm:$0x3]
          %444 = vst.msk [vmem:[%s357] sm:$0x3] %vm400, %v443
          %v445 = vld [vmem:[#allocation3] sm:$0x3]
          %446 = vst.msk [vmem:[%s361] sm:$0x3] %vm400, %v445
          %v447 = vld [vmem:[#allocation4] sm:$0x3f]
          %448 = vst.msk [vmem:[%s365] sm:$0x3f] %vm437, %v447
        $region52: #{tpu_custom_call.1} parent=31 // pred_fallthru
          _
        %p449 = scmp.lt.s32.totalorder %s27, 1
        %s450 = scalar_select %p449, %s27, 1
        %s451 = smul.addr %s450, 2
        %s452 = scalar_lea.vmem %s3, %s451
        %p453 = scmp.lt.s32.totalorder %s27, 1
        %s454 = scalar_select %p453, %s27, 1
        %s455 = smul.addr %s454, 2
        %s456 = scalar_lea.vmem %s4, %s455
        %p457 = scmp.lt.s32.totalorder %s27, 1
        %s458 = scalar_select %p457, %s27, 1
        %s459 = smul.addr %s458, 8
        %s460 = scalar_lea.vmem %s5, %s459
        // Predicated region
        $region53: #{tpu_custom_call.1} parent=31 // pred_check
          %p461 = pneg %p143
        $region54: #{tpu_custom_call.1} parent=31 // pred_check_branch
          %463 = sbr.rel (%p461) target = $region56
        $region55: #{tpu_custom_call.1} parent=31 // pred_region
          _
        $region56: #{tpu_custom_call.1} parent=31 // pred_fallthru
          _
        // Predicated region
        $region57: #{tpu_custom_call.1} parent=31 // pred_check
          %p464 = pneg %p169
        $region58: #{tpu_custom_call.1} parent=31 // pred_check_branch
          %466 = sbr.rel (%p464) target = $region60
        $region59: #{tpu_custom_call.1} parent=31 // pred_region
          _
        $region60: #{tpu_custom_call.1} parent=31 // pred_fallthru
          _
        // Predicated region
        $region61: #{tpu_custom_call.1} parent=31 // pred_check
          %p467 = pneg %p195
        $region62: #{tpu_custom_call.1} parent=31 // pred_check_branch
          %469 = sbr.rel (%p467) target = $region64
        $region63: #{tpu_custom_call.1} parent=31 // pred_region
          _
        $region64: #{tpu_custom_call.1} parent=31 // pred_fallthru
          _
      $region32: #{tpu_custom_call.1} parent=5 // pred_fallthru
        _
      %p470 = scmp.le.s32.totalorder 2, %s18
      // Predicated region
      $region65: #{tpu_custom_call.1} parent=5 // pred_check
        %p471 = pneg %p470
      $region66: #{tpu_custom_call.1} parent=5 // pred_check_branch
        %473 = sbr.rel (%p471) target = $region68
      $region67: #{tpu_custom_call.1} parent=5 // pred_region
        %s474 = ssub.s32 %s18, 2
        // Predicated region
        $region69: #{tpu_custom_call.1} parent=67 // pred_check
          %p475 = pneg %p149
        $region70: #{tpu_custom_call.1} parent=67 // pred_check_branch
          %477 = sbr.rel (%p475) target = $region72
        $region71: #{tpu_custom_call.1} parent=67 // pred_region
          %p478 = scmp.lt.s32.totalorder %s29, 1
          %s479 = scalar_select %p478, %s29, 1
          %s480 = smul.addr %s479, 2
          %s481 = scalar_lea.vmem %s3, %s480
        $region72: #{tpu_custom_call.1} parent=67 // pred_fallthru
          _
        // Predicated region
        $region73: #{tpu_custom_call.1} parent=67 // pred_check
          %p482 = pneg %p175
        $region74: #{tpu_custom_call.1} parent=67 // pred_check_branch
          %484 = sbr.rel (%p482) target = $region76
        $region75: #{tpu_custom_call.1} parent=67 // pred_region
          %p485 = scmp.lt.s32.totalorder %s29, 1
          %s486 = scalar_select %p485, %s29, 1
          %s487 = smul.addr %s486, 2
          %s488 = scalar_lea.vmem %s4, %s487
        $region76: #{tpu_custom_call.1} parent=67 // pred_fallthru
          _
        // Predicated region
        $region77: #{tpu_custom_call.1} parent=67 // pred_check
          %p489 = pneg %p201
        $region78: #{tpu_custom_call.1} parent=67 // pred_check_branch
          %491 = sbr.rel (%p489) target = $region80
        $region79: #{tpu_custom_call.1} parent=67 // pred_region
          %p492 = scmp.lt.s32.totalorder %s29, 1
          %s493 = scalar_select %p492, %s29, 1
          %s494 = smul.addr %s493, 8
          %s495 = scalar_lea.vmem %s5, %s494
        $region80: #{tpu_custom_call.1} parent=67 // pred_fallthru
          _
      $region68: #{tpu_custom_call.1} parent=5 // pred_fallthru
        _
    $region6: #{tpu_custom_call.1} parent=1 // loop_footer
      %s22 = sadd.s32 1, %s18
    $region7: #{tpu_custom_call.1} parent=1 // loop_footer_branch
      %17 = sbr.rel target = $region3
    $region8: #{tpu_custom_call.1} parent=1 // loop_exit
      _
    %496 = vsyncpa [#allocation6], 1
    %s497 = scalar_lea.sflag [#allocation6], 1
    %498 = vsyncpa %s497, 1
    %499 = vsyncpa [#allocation8], 1
    %s500 = scalar_lea.sflag [#allocation8], 1
    %501 = vsyncpa %s500, 1

</llo_original>
